<compile_context>
chip_gen: v6e
topology: v6e:2x2x1
jax: 0.10.0
libtpu: 0.0.40
codegen_flags: <defaults>
</compile_context>

<pallas_src>
import jax
import jax.numpy as jnp
from jax.experimental import pallas as pl
from jax.experimental.pallas import tpu as pltpu


def _make_hbm_copy_kernel(chunk_bounds):
    """Kernel factory: copy a (rows, cols) array HBM->HBM via chunked DMAs.

    `chunk_bounds` is a static Python list of (row_start, row_size) tuples.
    All copies are started first (kept in flight together), then waited on.
    """

    def kernel(x_hbm, o_hbm, sems):
        copies = []
        for i, (start, size) in enumerate(chunk_bounds):
            cp = pltpu.make_async_copy(
                x_hbm.at[pl.ds(start, size), :],
                o_hbm.at[pl.ds(start, size), :],
                sems.at[i],
            )
            cp.start()
            copies.append(cp)
        for cp in copies:
            cp.wait()

    return kernel


def base_module_forward(x: jax.Array, *, force_pallas_copy: bool = True) -> jax.Array:
    """Pass-through (identity) — the forward of the abstract BaseModule.

    force_pallas_copy=False is the true optimum (no kernel, 0 HBM traffic).
    force_pallas_copy=True materializes the copy with a direct HBM->HBM
    async-DMA Pallas kernel (no VMEM staging).
    """
    if not force_pallas_copy:
        return x

    orig_shape = x.shape
    total = x.size
    if total == 0:
        return x

    # --- choose a contiguous 2-D view; prefer a lane-dense last dim --------
    # (For DMA this only affects descriptor shapes; any choice is safe since
    #  there is no VMEM buffer whose size depends on it.)
    cols = None
    for c in (8192, 4096, 2048, 1024, 512, 256, 128):
        if total % c == 0:
            cols = c
            break
    if cols is None:
        # Irregular size: one long contiguous row. Safe — no VMEM staging.
        cols = total
    rows = total // cols
    x2d = x.reshape(rows, cols)

    # --- static row-chunking: keep 2-4 DMAs in flight -----------------------
    n_chunks = min(4, rows)
    base = rows // n_chunks
    rem = rows % n_chunks
    chunk_bounds = []
    start = 0
    for i in range(n_chunks):
        size = base + (1 if i < rem else 0)
        chunk_bounds.append((start, size))
        start += size
    assert start == rows

    itemsize = x.dtype.itemsize
    y2d = pl.pallas_call(
        _make_hbm_copy_kernel(chunk_bounds),
        out_shape=jax.ShapeDtypeStruct((rows, cols), x.dtype),
        in_specs=[pl.BlockSpec(memory_space=pl.ANY)],
        out_specs=pl.BlockSpec(memory_space=pl.ANY),
        scratch_shapes=[pltpu.SemaphoreType.DMA((n_chunks,))],
        cost_estimate=pl.CostEstimate(
            flops=0,
            transcendentals=0,
            bytes_accessed=2 * total * itemsize,
        ),
    )(x2d)
    return y2d.reshape(orig_shape)


if __name__ == "__main__":
    key = jax.random.PRNGKey(0)
    # Small NCHW input consistent with what BaseModule subclasses consume.
    x = jax.random.normal(key, (2, 4, 16, 16), dtype=jnp.float32)

    # Pallas HBM->HBM DMA copy path (the kernel under test).
    y = base_module_forward(x, force_pallas_copy=True)
    y = jax.block_until_ready(y)
    assert y.shape == x.shape and y.dtype == x.dtype
    assert jnp.array_equal(y, x), "identity pass-through mismatch (pallas path)"

    # Zero-cost path (the true optimum per the perf review).
    y0 = base_module_forward(x, force_pallas_copy=False)
    assert y0 is x

    print("KERNEL_OK")
</pallas_src>

<mosaic_0001>
module attributes {stable_mosaic.version = 11 : i64} {
  func.func @kernel(%arg0: memref<1x2048xf32, #tpu.memory_space<any>>, %arg1: memref<1x2048xf32, #tpu.memory_space<any>>, %arg2: memref<1x!tpu.dma_semaphore, #tpu.memory_space<semaphore_mem>>) attributes {dimension_semantics = [], scalar_prefetch = 0 : i64, scratch_operands = 1 : i64, tpu.core_type = #tpu.core_type<tc>} {
    %c0_i32 = arith.constant 0 : i32
    %c0_i32_0 = arith.constant 0 : i32
    %c0_i32_1 = arith.constant 0 : i32
    %0 = tpu.memref_slice %arg0[%c0_i32_0, %c0_i32_1] : memref<1x2048xf32, #tpu.memory_space<any>> -> memref<1x2048xf32, #tpu.memory_space<any>>
    %c0_i32_2 = arith.constant 0 : i32
    %c0_i32_3 = arith.constant 0 : i32
    %1 = tpu.memref_slice %arg1[%c0_i32_2, %c0_i32_3] : memref<1x2048xf32, #tpu.memory_space<any>> -> memref<1x2048xf32, #tpu.memory_space<any>>
    %2 = tpu.memref_slice %arg2[%c0_i32] : memref<1x!tpu.dma_semaphore, #tpu.memory_space<semaphore_mem>> -> memref<1x!tpu.dma_semaphore, #tpu.memory_space<semaphore_mem>>
    %3 = tpu.memref_squeeze %2 : memref<1x!tpu.dma_semaphore, #tpu.memory_space<semaphore_mem>> -> memref<!tpu.dma_semaphore, #tpu.memory_space<semaphore_mem>>
    tpu.enqueue_dma source(%0 : memref<1x2048xf32, #tpu.memory_space<any>>) target(%1 : memref<1x2048xf32, #tpu.memory_space<any>>) target_semaphore(%3 : memref<!tpu.dma_semaphore, #tpu.memory_space<semaphore_mem>>)
    %c0_i32_4 = arith.constant 0 : i32
    %c0_i32_5 = arith.constant 0 : i32
    %c0_i32_6 = arith.constant 0 : i32
    %4 = tpu.memref_slice %arg0[%c0_i32_5, %c0_i32_6] : memref<1x2048xf32, #tpu.memory_space<any>> -> memref<1x2048xf32, #tpu.memory_space<any>>
    %c0_i32_7 = arith.constant 0 : i32
    %c0_i32_8 = arith.constant 0 : i32
    %5 = tpu.memref_slice %arg1[%c0_i32_7, %c0_i32_8] : memref<1x2048xf32, #tpu.memory_space<any>> -> memref<1x2048xf32, #tpu.memory_space<any>>
    %6 = tpu.memref_slice %arg2[%c0_i32_4] : memref<1x!tpu.dma_semaphore, #tpu.memory_space<semaphore_mem>> -> memref<1x!tpu.dma_semaphore, #tpu.memory_space<semaphore_mem>>
    %7 = tpu.memref_squeeze %6 : memref<1x!tpu.dma_semaphore, #tpu.memory_space<semaphore_mem>> -> memref<!tpu.dma_semaphore, #tpu.memory_space<semaphore_mem>>
    tpu.wait_dma2 semaphore(%7 : memref<!tpu.dma_semaphore, #tpu.memory_space<semaphore_mem>>) src(%4 : memref<1x2048xf32, #tpu.memory_space<any>>) dst(%5 : memref<1x2048xf32, #tpu.memory_space<any>>)
    return
  }
}

</mosaic_0001>

<llo_original>
// kernel: tpu_custom_call.1
$region0: #{tpu_custom_call.1}
  #allocation0 [shape = 'u32[]', space=smem, size = 0x4, offset = 0x4, fixed_abs, tag = 'smem constant byte address 0x4 - core index']
  #allocation1 [shape = 'u32[144,128]{1,0:T(1,128)}', space=vmem, size = 0x12000, scoped, tag = 'internal scratch']
  #allocation2 [shape = 's32[1]{0}', space=sflag, size = 0x4, scoped, tag = 'scratch operand']
  #allocation3 [shape = 's32[]', space=sflag, size = 0x4, offset = 0, fixed_abs, tag = 'sflag constant byte address 0x0 - dummy sync flag']
  #allocation4 [shape = 'u32[0]{0}', space=smem, size = 0, offset = 0, fixed_abs, tag = 'smem constant byte address 0x0 - null']
  %s0 = inlined_call_operand.hbm [shape: f32[1,2048], index: 0, kind: input, shape index: {}]
  %s1 = inlined_call_operand.hbm [shape: f32[1,2048], index: 1, kind: output, shape index: {}]
  %s2 = sld [smem:[#allocation0]]
  $region2: #{tpu_custom_call.1} parent=0
    _
  %s4 = ssub.s32 1, %s2
  %s5 = scalar_select 0, %s4, %s2
  %s7 = sshll.u32 1, 14
  %s8 = sxor.u32 4294967295, %s7
  %12 = dma.general %s0, 256, %s1, [#allocation2], 131072, [#allocation4], 0, 0
  %s13 = smul.u32 1, 16
  %s14 = sshll.u32 %s13, 4
  %15 = dma.done [#allocation2], %s14
  %16 = vsyncmov [#allocation2]
  %s17 = vpop.sfrf %16
  %p18 = scmp.eq.s32.totalorder %s17, 0
  %p19 = pneg %p18
  %21 = shalt.err (%p19)

</llo_original>
